<compile_context>
chip_gen: v7x
topology: tpu7x:2x2x1
jax: 0.10.0
libtpu: 0.0.40
codegen_flags: <defaults>
</compile_context>

<pallas_src>
import functools

import jax
import jax.numpy as jnp
from jax.experimental import pallas as pl
from jax.experimental.pallas import tpu as pltpu


def _net_kernel(x_ref, y_ref, w_ref, p_ref, out_ref, acc_x_ref, acc_y_ref):
    k = pl.program_id(0)

    @pl.when(k == 0)
    def _init():
        acc_x_ref[...] = jnp.zeros_like(acc_x_ref)
        acc_y_ref[...] = jnp.zeros_like(acc_y_ref)

    # Two MXU matmuls per step against the same W tile, f32 accumulation.
    w_tile = w_ref[...]
    acc_x_ref[...] += jnp.dot(x_ref[...], w_tile,
                              preferred_element_type=jnp.float32)
    acc_y_ref[...] += jnp.dot(y_ref[...], w_tile,
                              preferred_element_type=jnp.float32)

    @pl.when(k == pl.num_programs(0) - 1)
    def _finalize():
        p = p_ref[...]                      # stacked params, f32, rows:
        bias = p[0:1, :]                    # 0: linear bias
        gx, bx = p[1:2, :], p[2:3, :]       # 1,2: bn_x gamma/beta
        gy, by = p[3:4, :], p[4:5, :]       # 3,4: bn_y gamma/beta

        nb = acc_x_ref.shape[0]
        inv_n = jnp.float32(1.0 / nb)
        eps_bn = jnp.float32(1e-5)

        def bn_tanh(acc, g, bt):
            # Training-mode BatchNorm1d: per-feature batch mean, biased var,
            # centered two-pass variance (matches PyTorch, no cancellation).
            z = acc + bias
            mu = jnp.sum(z, axis=0, keepdims=True) * inv_n
            d = z - mu
            var = jnp.sum(d * d, axis=0, keepdims=True) * inv_n
            return jnp.tanh(d * jax.lax.rsqrt(var + eps_bn) * g + bt)

        # Transpose the (small, E-reduced) activations so the cosine reductions
        # and the final store are lane-dense: [B, E] -> [E, B].
        hx = jnp.transpose(bn_tanh(acc_x_ref[...], gx, bx))
        hy = jnp.transpose(bn_tanh(acc_y_ref[...], gy, by))

        # CosineSimilarity(dim=1, eps=1e-8):
        #   num / (max(||hx||, eps) * max(||hy||, eps))
        # = num * rsqrt(max(sx, eps^2)) * rsqrt(max(sy, eps^2))   (exact)
        eps2 = jnp.float32(1e-16)
        num = jnp.sum(hx * hy, axis=0, keepdims=True)   # [1, B]
        sx = jnp.sum(hx * hx, axis=0, keepdims=True)
        sy = jnp.sum(hy * hy, axis=0, keepdims=True)
        r = (num
             * jax.lax.rsqrt(jnp.maximum(sx, eps2))
             * jax.lax.rsqrt(jnp.maximum(sy, eps2)))

        out_ref[...] = r.astype(out_ref.dtype)


def _vmem_capacity_bytes():
    try:
        return int(pltpu.get_tpu_info().vmem_capacity_bytes)
    except Exception:
        return 64 << 20   # conservative fallback (fits v7x's 64 MiB per TC)


def _pick_block_v(B, V, E, itemsize, tile_budget):
    """Largest reduction tile whose double-buffered working set fits VMEM."""
    def tile_bytes(bv):
        # Double-buffered x, y tiles and W tile.
        return 2 * (2 * B * bv + bv * E) * itemsize

    fixed = 2 * B * E * 4 + 8 * E * 4 + B * 4   # accumulators + params + output

    if tile_bytes(V) + fixed <= tile_budget:
        return V                                 # single-shot, no pipeline overhead
    for cand in (8192, 4096, 2048, 1024, 512, 256, 128):
        if V % cand == 0 and tile_bytes(cand) + fixed <= tile_budget:
            return cand
    return 128 if V % 128 == 0 else V            # last resort


@functools.partial(jax.jit, static_argnames=("block_v", "input_dtype"))
def net_forward(x, y, w, b, gamma_x, beta_x, gamma_y, beta_y,
                *, block_v=None, input_dtype=jnp.bfloat16):
    """x, y: [B, V]; w: [V, E] (pre-transposed nn.Linear weight);
    b / gammas / betas: [1, E].  Returns cosine similarity, shape [B].

    Matmul operands are cast to `input_dtype` (default bf16; halves HBM traffic
    on this memory-bound kernel on every TPU generation).  Accumulation and the
    BN/tanh/cosine epilogue are always f32.  Pass input_dtype=jnp.float32 for
    bit-faithful f32 numerics.
    """
    B, V = x.shape
    E = w.shape[1]

    mm_dtype = jnp.dtype(input_dtype)
    itemsize = mm_dtype.itemsize

    # VMEM budget: ~48 MiB scoped on v7x (64 MiB physical), ~96 MiB on v5e/v6e.
    vmem_cap = _vmem_capacity_bytes()
    vmem_limit = min((vmem_cap * 3) // 4, 96 << 20)
    tile_budget = (vmem_limit * 3) // 4          # headroom inside the limit

    if block_v is None:
        block_v = _pick_block_v(B, V, E, itemsize, tile_budget)
    assert V % block_v == 0, (V, block_v)
    num_k = V // block_v

    x_mm = x.astype(mm_dtype)
    y_mm = y.astype(mm_dtype)
    w_mm = w.astype(mm_dtype)

    # Collapse the five tiny (1, E) parameter streams into one (8, E) input
    # (rows 5..7 are padding for sublane alignment); always f32.
    params = jnp.concatenate(
        [b, gamma_x, beta_x, gamma_y, beta_y,
         jnp.zeros((3, E), jnp.float32)], axis=0).astype(jnp.float32)

    cost = pl.CostEstimate(
        flops=4 * B * V * E,                        # two [B,V]@[V,E] matmuls
        transcendentals=2 * B * E + 2 * E + 2 * B,  # tanh + rsqrts
        bytes_accessed=((2 * B * V + V * E) * itemsize + 8 * E * 4 + B * 4),
    )

    out = pl.pallas_call(
        _net_kernel,
        out_shape=jax.ShapeDtypeStruct((1, B), jnp.float32),
        grid=(num_k,),
        in_specs=[
            pl.BlockSpec((B, block_v), lambda k: (0, k)),   # x tile
            pl.BlockSpec((B, block_v), lambda k: (0, k)),   # y tile
            pl.BlockSpec((block_v, E), lambda k: (k, 0)),   # W^T tile
            pl.BlockSpec((8, E), lambda k: (0, 0)),         # stacked params
        ],
        # Output block constant across the reduction axis -> resident; written
        # once on the last step, lane-dense (B on lanes).
        out_specs=pl.BlockSpec((1, B), lambda k: (0, 0)),
        scratch_shapes=[pltpu.VMEM((B, E), jnp.float32),    # acc_x
                        pltpu.VMEM((B, E), jnp.float32)],   # acc_y
        compiler_params=pltpu.CompilerParams(
            dimension_semantics=("arbitrary",),
            vmem_limit_bytes=int(vmem_limit)),
        cost_estimate=cost,
    )(x_mm, y_mm, w_mm, params)

    # NOTE: a two-TC (v7x) variant splitting the x / y halves across cores is
    # possible but only pays off once one core cannot saturate HBM.
    return out[0]


if __name__ == "__main__":
    # Small shapes consistent with the module: batch=8, vocab=256, embed=16.
    B, V, E = 8, 256, 16

    key = jax.random.PRNGKey(0)
    kx, ky, kw, kb = jax.random.split(key, 4)

    x = jax.random.normal(kx, (B, V), dtype=jnp.float32)
    y = jax.random.normal(ky, (B, V), dtype=jnp.float32)

    # nn.Linear default init: uniform(-1/sqrt(V), 1/sqrt(V)); weight stored as W^T.
    bound = 1.0 / (V ** 0.5)
    w = jax.random.uniform(kw, (V, E), minval=-bound, maxval=bound,
                           dtype=jnp.float32)
    b = jax.random.uniform(kb, (1, E), minval=-bound, maxval=bound,
                           dtype=jnp.float32)

    # BatchNorm1d default affine init: gamma=1, beta=0.
    gamma_x = jnp.ones((1, E), jnp.float32)
    beta_x = jnp.zeros((1, E), jnp.float32)
    gamma_y = jnp.ones((1, E), jnp.float32)
    beta_y = jnp.zeros((1, E), jnp.float32)

    # Pure-JAX reference (PyTorch training-mode semantics); matmul dtype
    # parameterized so both the f32 and bf16-operand kernel paths are checked.
    def ref_forward(x, y, mm_dtype):
        ex = jnp.dot(x.astype(mm_dtype), w.astype(mm_dtype),
                     preferred_element_type=jnp.float32) + b
        ey = jnp.dot(y.astype(mm_dtype), w.astype(mm_dtype),
                     preferred_element_type=jnp.float32) + b

        def bn(z, g, bt):
            mu = z.mean(0, keepdims=True)
            var = ((z - mu) ** 2).mean(0, keepdims=True)
            return (z - mu) / jnp.sqrt(var + 1e-5) * g + bt

        hx = jnp.tanh(bn(ex, gamma_x, beta_x))
        hy = jnp.tanh(bn(ey, gamma_y, beta_y))
        nx = jnp.maximum(jnp.linalg.norm(hx, axis=1), 1e-8)
        ny = jnp.maximum(jnp.linalg.norm(hy, axis=1), 1e-8)
        return (hx * hy).sum(1) / (nx * ny)

    # 1) Exact-precision path (f32 operands) vs f32 reference.
    r_f32 = net_forward(x, y, w, b, gamma_x, beta_x, gamma_y, beta_y,
                        input_dtype=jnp.float32)
    jax.block_until_ready(r_f32)
    ref_f32 = ref_forward(x, y, jnp.float32)
    assert r_f32.shape == (B,)
    assert jnp.allclose(r_f32, ref_f32, atol=1e-5, rtol=1e-5), (r_f32, ref_f32)

    # 2) Default fast path (bf16 matmul operands) vs bf16-matmul reference.
    r_bf16 = net_forward(x, y, w, b, gamma_x, beta_x, gamma_y, beta_y)
    jax.block_until_ready(r_bf16)
    ref_bf16 = ref_forward(x, y, jnp.bfloat16)
    assert r_bf16.shape == (B,)
    assert jnp.allclose(r_bf16, ref_bf16, atol=1e-4, rtol=1e-4), (r_bf16, ref_bf16)

    print("KERNEL_OK")
</pallas_src>

<mosaic_0001>
module attributes {stable_mosaic.version = 11 : i64} {
  func.func @_net_kernel(%arg0: i32, %arg1: memref<8x256xf32, #tpu.memory_space<vmem>>, %arg2: memref<8x256xf32, #tpu.memory_space<vmem>>, %arg3: memref<256x16xf32, #tpu.memory_space<vmem>>, %arg4: memref<8x16xf32, #tpu.memory_space<vmem>>, %arg5: memref<1x8xf32, #tpu.memory_space<vmem>>, %arg6: memref<8x16xf32, #tpu.memory_space<vmem>>, %arg7: memref<8x16xf32, #tpu.memory_space<vmem>>) attributes {dimension_semantics = [#tpu.dimension_semantics<arbitrary>], iteration_bounds = array<i64: 1>, scalar_prefetch = 0 : i64, scratch_operands = 2 : i64, tpu.core_type = #tpu.core_type<tc>, window_params = [{transform_indices = @transform_0, window_bounds = array<i64: 8, 256>}, {transform_indices = @transform_1, window_bounds = array<i64: 8, 256>}, {transform_indices = @transform_2, window_bounds = array<i64: 256, 16>}, {pipeline_mode = #tpu.pipeline_mode<synchronous>, transform_indices = @transform_3, window_bounds = array<i64: 8, 16>}, {pipeline_mode = #tpu.pipeline_mode<synchronous>, transform_indices = @transform_4, window_bounds = array<i64: 1, 8>}]} {
    %c0_i32 = arith.constant 0 : i32
    %0 = arith.cmpi eq, %arg0, %c0_i32 : i32
    %1 = arith.extui %0 : i1 to i32
    %c0_i32_0 = arith.constant 0 : i32
    %2 = arith.cmpi ne, %1, %c0_i32_0 : i32
    scf.if %2 {
      %cst_17 = arith.constant 0.000000e+00 : f32
      %17 = vector.broadcast %cst_17 : f32 to vector<8x16xf32>
      %c0_18 = arith.constant 0 : index
      %c0_19 = arith.constant 0 : index
      %18 = vector.load %arg6[%c0_18, %c0_19] : memref<8x16xf32, #tpu.memory_space<vmem>>, vector<8x16xf32>
      tpu.vector_store %arg6[%c0_18, %c0_19], %17 {strides = array<i32>} : memref<8x16xf32, #tpu.memory_space<vmem>>, vector<8x16xf32>,
      %cst_20 = arith.constant 0.000000e+00 : f32
      %19 = vector.broadcast %cst_20 : f32 to vector<8x16xf32>
      %c0_21 = arith.constant 0 : index
      %c0_22 = arith.constant 0 : index
      %20 = vector.load %arg7[%c0_21, %c0_22] : memref<8x16xf32, #tpu.memory_space<vmem>>, vector<8x16xf32>
      tpu.vector_store %arg7[%c0_21, %c0_22], %19 {strides = array<i32>} : memref<8x16xf32, #tpu.memory_space<vmem>>, vector<8x16xf32>,
    } else {
    }
    %c0 = arith.constant 0 : index
    %c0_1 = arith.constant 0 : index
    %3 = vector.load %arg3[%c0, %c0_1] : memref<256x16xf32, #tpu.memory_space<vmem>>, vector<256x16xf32>
    %c0_2 = arith.constant 0 : index
    %c0_3 = arith.constant 0 : index
    %4 = vector.load %arg6[%c0_2, %c0_3] : memref<8x16xf32, #tpu.memory_space<vmem>>, vector<8x16xf32>
    %c0_4 = arith.constant 0 : index
    %c0_5 = arith.constant 0 : index
    %5 = vector.load %arg1[%c0_4, %c0_5] : memref<8x256xf32, #tpu.memory_space<vmem>>, vector<8x256xf32>
    %cst = arith.constant dense<0.000000e+00> : vector<8x16xf32>
    %6 = tpu.matmul %5, %3, %cst {dimension_numbers = #tpu.dot_dimension_numbers<[1], [0], [0], [1], [0, 0, 1, 1], [], []>} : vector<8x256xf32>, vector<256x16xf32>, vector<8x16xf32> -> vector<8x16xf32>
    %7 = arith.addf %4, %6 : vector<8x16xf32>
    %c0_6 = arith.constant 0 : index
    %c0_7 = arith.constant 0 : index
    %8 = vector.load %arg6[%c0_6, %c0_7] : memref<8x16xf32, #tpu.memory_space<vmem>>, vector<8x16xf32>
    tpu.vector_store %arg6[%c0_6, %c0_7], %7 {strides = array<i32>} : memref<8x16xf32, #tpu.memory_space<vmem>>, vector<8x16xf32>,
    %c0_8 = arith.constant 0 : index
    %c0_9 = arith.constant 0 : index
    %9 = vector.load %arg7[%c0_8, %c0_9] : memref<8x16xf32, #tpu.memory_space<vmem>>, vector<8x16xf32>
    %c0_10 = arith.constant 0 : index
    %c0_11 = arith.constant 0 : index
    %10 = vector.load %arg2[%c0_10, %c0_11] : memref<8x256xf32, #tpu.memory_space<vmem>>, vector<8x256xf32>
    %cst_12 = arith.constant dense<0.000000e+00> : vector<8x16xf32>
    %11 = tpu.matmul %10, %3, %cst_12 {dimension_numbers = #tpu.dot_dimension_numbers<[1], [0], [0], [1], [0, 0, 1, 1], [], []>} : vector<8x256xf32>, vector<256x16xf32>, vector<8x16xf32> -> vector<8x16xf32>
    %12 = arith.addf %9, %11 : vector<8x16xf32>
    %c0_13 = arith.constant 0 : index
    %c0_14 = arith.constant 0 : index
    %13 = vector.load %arg7[%c0_13, %c0_14] : memref<8x16xf32, #tpu.memory_space<vmem>>, vector<8x16xf32>
    tpu.vector_store %arg7[%c0_13, %c0_14], %12 {strides = array<i32>} : memref<8x16xf32, #tpu.memory_space<vmem>>, vector<8x16xf32>,
    %c0_i32_15 = arith.constant 0 : i32
    %14 = arith.cmpi eq, %arg0, %c0_i32_15 : i32
    %15 = arith.extui %14 : i1 to i32
    %c0_i32_16 = arith.constant 0 : i32
    %16 = arith.cmpi ne, %15, %c0_i32_16 : i32
    scf.if %16 {
      %c0_17 = arith.constant 0 : index
      %c0_18 = arith.constant 0 : index
      %17 = vector.load %arg4[%c0_17, %c0_18] : memref<8x16xf32, #tpu.memory_space<vmem>>, vector<8x16xf32>
      %18 = vector.extract_strided_slice %17 {offsets = [0, 0], sizes = [1, 16], strides = [1, 1]} : vector<8x16xf32> to vector<1x16xf32>
      %19 = vector.extract_strided_slice %17 {offsets = [1, 0], sizes = [1, 16], strides = [1, 1]} : vector<8x16xf32> to vector<1x16xf32>
      %20 = vector.extract_strided_slice %17 {offsets = [2, 0], sizes = [1, 16], strides = [1, 1]} : vector<8x16xf32> to vector<1x16xf32>
      %21 = vector.extract_strided_slice %17 {offsets = [3, 0], sizes = [1, 16], strides = [1, 1]} : vector<8x16xf32> to vector<1x16xf32>
      %22 = vector.extract_strided_slice %17 {offsets = [4, 0], sizes = [1, 16], strides = [1, 1]} : vector<8x16xf32> to vector<1x16xf32>
      %c0_19 = arith.constant 0 : index
      %c0_20 = arith.constant 0 : index
      %23 = vector.load %arg6[%c0_19, %c0_20] : memref<8x16xf32, #tpu.memory_space<vmem>>, vector<8x16xf32>
      %24 = vector.broadcast %18 : vector<1x16xf32> to vector<8x16xf32>
      %25 = arith.addf %23, %24 : vector<8x16xf32>
      %cst_21 = arith.constant dense<0.000000e+00> : vector<16xf32>
      %26 = vector.multi_reduction <add>, %25, %cst_21 [0] : vector<8x16xf32> to vector<16xf32>
      %27 = vector.shape_cast %26 : vector<16xf32> to vector<1x16xf32>
      %cst_22 = arith.constant 1.250000e-01 : f32
      %28 = vector.broadcast %cst_22 : f32 to vector<1x16xf32>
      %29 = arith.mulf %27, %28 : vector<1x16xf32>
      %30 = vector.broadcast %29 : vector<1x16xf32> to vector<8x16xf32>
      %31 = arith.subf %25, %30 : vector<8x16xf32>
      %32 = arith.mulf %31, %31 : vector<8x16xf32>
      %cst_23 = arith.constant dense<0.000000e+00> : vector<16xf32>
      %33 = vector.multi_reduction <add>, %32, %cst_23 [0] : vector<8x16xf32> to vector<16xf32>
      %34 = vector.shape_cast %33 : vector<16xf32> to vector<1x16xf32>
      %cst_24 = arith.constant 1.250000e-01 : f32
      %35 = vector.broadcast %cst_24 : f32 to vector<1x16xf32>
      %36 = arith.mulf %34, %35 : vector<1x16xf32>
      %cst_25 = arith.constant 9.99999974E-6 : f32
      %37 = vector.broadcast %cst_25 : f32 to vector<1x16xf32>
      %38 = arith.addf %36, %37 : vector<1x16xf32>
      %39 = math.rsqrt %38 : vector<1x16xf32>
      %40 = vector.broadcast %39 : vector<1x16xf32> to vector<8x16xf32>
      %41 = arith.mulf %31, %40 : vector<8x16xf32>
      %42 = vector.broadcast %19 : vector<1x16xf32> to vector<8x16xf32>
      %43 = arith.mulf %41, %42 : vector<8x16xf32>
      %44 = vector.broadcast %20 : vector<1x16xf32> to vector<8x16xf32>
      %45 = arith.addf %43, %44 : vector<8x16xf32>
      %46 = math.tanh %45 : vector<8x16xf32>
      %47 = tpu.transpose %46, [1, 0] : vector<8x16xf32> -> vector<16x8xf32>
      %c0_26 = arith.constant 0 : index
      %c0_27 = arith.constant 0 : index
      %48 = vector.load %arg7[%c0_26, %c0_27] : memref<8x16xf32, #tpu.memory_space<vmem>>, vector<8x16xf32>
      %49 = vector.broadcast %18 : vector<1x16xf32> to vector<8x16xf32>
      %50 = arith.addf %48, %49 : vector<8x16xf32>
      %cst_28 = arith.constant dense<0.000000e+00> : vector<16xf32>
      %51 = vector.multi_reduction <add>, %50, %cst_28 [0] : vector<8x16xf32> to vector<16xf32>
      %52 = vector.shape_cast %51 : vector<16xf32> to vector<1x16xf32>
      %cst_29 = arith.constant 1.250000e-01 : f32
      %53 = vector.broadcast %cst_29 : f32 to vector<1x16xf32>
      %54 = arith.mulf %52, %53 : vector<1x16xf32>
      %55 = vector.broadcast %54 : vector<1x16xf32> to vector<8x16xf32>
      %56 = arith.subf %50, %55 : vector<8x16xf32>
      %57 = arith.mulf %56, %56 : vector<8x16xf32>
      %cst_30 = arith.constant dense<0.000000e+00> : vector<16xf32>
      %58 = vector.multi_reduction <add>, %57, %cst_30 [0] : vector<8x16xf32> to vector<16xf32>
      %59 = vector.shape_cast %58 : vector<16xf32> to vector<1x16xf32>
      %cst_31 = arith.constant 1.250000e-01 : f32
      %60 = vector.broadcast %cst_31 : f32 to vector<1x16xf32>
      %61 = arith.mulf %59, %60 : vector<1x16xf32>
      %cst_32 = arith.constant 9.99999974E-6 : f32
      %62 = vector.broadcast %cst_32 : f32 to vector<1x16xf32>
      %63 = arith.addf %61, %62 : vector<1x16xf32>
      %64 = math.rsqrt %63 : vector<1x16xf32>
      %65 = vector.broadcast %64 : vector<1x16xf32> to vector<8x16xf32>
      %66 = arith.mulf %56, %65 : vector<8x16xf32>
      %67 = vector.broadcast %21 : vector<1x16xf32> to vector<8x16xf32>
      %68 = arith.mulf %66, %67 : vector<8x16xf32>
      %69 = vector.broadcast %22 : vector<1x16xf32> to vector<8x16xf32>
      %70 = arith.addf %68, %69 : vector<8x16xf32>
      %71 = math.tanh %70 : vector<8x16xf32>
      %72 = tpu.transpose %71, [1, 0] : vector<8x16xf32> -> vector<16x8xf32>
      %73 = arith.mulf %47, %72 : vector<16x8xf32>
      %cst_33 = arith.constant dense<0.000000e+00> : vector<8xf32>
      %74 = vector.multi_reduction <add>, %73, %cst_33 [0] : vector<16x8xf32> to vector<8xf32>
      %75 = vector.shape_cast %74 : vector<8xf32> to vector<1x8xf32>
      %76 = arith.mulf %47, %47 : vector<16x8xf32>
      %cst_34 = arith.constant dense<0.000000e+00> : vector<8xf32>
      %77 = vector.multi_reduction <add>, %76, %cst_34 [0] : vector<16x8xf32> to vector<8xf32>
      %78 = vector.shape_cast %77 : vector<8xf32> to vector<1x8xf32>
      %79 = arith.mulf %72, %72 : vector<16x8xf32>
      %cst_35 = arith.constant dense<0.000000e+00> : vector<8xf32>
      %80 = vector.multi_reduction <add>, %79, %cst_35 [0] : vector<16x8xf32> to vector<8xf32>
      %81 = vector.shape_cast %80 : vector<8xf32> to vector<1x8xf32>
      %cst_36 = arith.constant 1.000000e-16 : f32
      %82 = vector.broadcast %cst_36 : f32 to vector<1x8xf32>
      %83 = arith.maximumf %78, %82 : vector<1x8xf32>
      %84 = math.rsqrt %83 : vector<1x8xf32>
      %85 = arith.mulf %75, %84 : vector<1x8xf32>
      %cst_37 = arith.constant 1.000000e-16 : f32
      %86 = vector.broadcast %cst_37 : f32 to vector<1x8xf32>
      %87 = arith.maximumf %81, %86 : vector<1x8xf32>
      %88 = math.rsqrt %87 : vector<1x8xf32>
      %89 = arith.mulf %85, %88 : vector<1x8xf32>
      %c0_38 = arith.constant 0 : index
      %c0_39 = arith.constant 0 : index
      %90 = vector.load %arg5[%c0_38, %c0_39] : memref<1x8xf32, #tpu.memory_space<vmem>>, vector<1x8xf32>
      tpu.vector_store %arg5[%c0_38, %c0_39], %89 {strides = array<i32>} : memref<1x8xf32, #tpu.memory_space<vmem>>, vector<1x8xf32>,
    } else {
    }
    return
  }
  func.func @transform_0(%arg0: i32) -> (i32, i32) {
    %c0_i32 = arith.constant 0 : i32
    %c0_i32_0 = arith.constant 0 : i32
    return %c0_i32, %arg0 : i32, i32
  }
  func.func @transform_1(%arg0: i32) -> (i32, i32) {
    %c0_i32 = arith.constant 0 : i32
    %c0_i32_0 = arith.constant 0 : i32
    return %c0_i32, %arg0 : i32, i32
  }
  func.func @transform_2(%arg0: i32) -> (i32, i32) {
    %c0_i32 = arith.constant 0 : i32
    %c0_i32_0 = arith.constant 0 : i32
    return %arg0, %c0_i32 : i32, i32
  }
  func.func @transform_3(%arg0: i32) -> (i32, i32) {
    %c0_i32 = arith.constant 0 : i32
    %c0_i32_0 = arith.constant 0 : i32
    %c0_i32_1 = arith.constant 0 : i32
    return %c0_i32, %c0_i32_0 : i32, i32
  }
  func.func @transform_4(%arg0: i32) -> (i32, i32) {
    %c0_i32 = arith.constant 0 : i32
    %c0_i32_0 = arith.constant 0 : i32
    %c0_i32_1 = arith.constant 0 : i32
    return %c0_i32, %c0_i32_0 : i32, i32
  }
}

</mosaic_0001>

<llo_original>
// kernel: net_forward.1
$region0: #{net_forward.1}
  #allocation0 [shape = 'u32[]', space=smem, size = 0x4, offset = 0x4, fixed_abs, tag = 'smem constant byte address 0x4 - core index']
  #allocation1 [shape = 'u32[144,128]{1,0:T(1,128)}', space=vmem, size = 0x12000, scoped, tag = 'internal scratch']
  #allocation2 [shape = 'f32[8,16]{1,0:T(8,128)}', space=vmem, size = 0x1000, scoped, tag = 'scratch operand']
  #allocation3 [shape = 'f32[8,16]{1,0:T(8,128)}', space=vmem, size = 0x1000, scoped, tag = 'scratch operand']
  %s0 = inlined_call_operand.vmem [shape: f32[8,256], index: 0, kind: input, shape index: {}]
  %s1 = inlined_call_operand.vmem [shape: f32[8,256], index: 1, kind: input, shape index: {}]
  %s2 = inlined_call_operand.vmem [shape: f32[256,16], index: 2, kind: input, shape index: {}]
  %s3 = inlined_call_operand.vmem [shape: f32[8,16], index: 3, kind: input, shape index: {}]
  %s4 = inlined_call_operand.hbm [shape: f32[1,8], index: 4, kind: output, shape index: {}]
  %s5 = sld [smem:[#allocation0]]
  $region34: #{net_forward.1} parent=0
    _
  %s7 = ssub.s32 1, %s5
  %s8 = scalar_select 0, %s7, %s5
  $region1: #{net_forward.1} parent=0
    #allocation4 [shape = 'u8[512]{0}', space=vmem, size = 0x400, scoped, tag = 'output window, operand 0, single buffered']
    #allocation5 [shape = 's32[1]{0}', space=sflag, size = 0x4, scoped, tag = 'scoped memory for net_forward.1']
    %9 = vsyncpa [#allocation5], 0
    // Predicated region
    $region2: #{net_forward.1} parent=1 // pred_check
      _
    $region3: #{net_forward.1} parent=1 // pred_check_branch
      %11 = sbr.rel (0) target = $region5
    $region4: #{net_forward.1} parent=1 // pred_region
      _
    $region5: #{net_forward.1} parent=1 // pred_fallthru
      _
    // Predicated region
    $region6: #{net_forward.1} parent=1 // pred_check
      _
    $region7: #{net_forward.1} parent=1 // pred_check_branch
      %13 = sbr.rel (0) target = $region9
    $region8: #{net_forward.1} parent=1 // pred_region
      _
    $region9: #{net_forward.1} parent=1 // pred_fallthru
      _
    // Predicated region
    $region10: #{net_forward.1} parent=1 // pred_check
      _
    $region11: #{net_forward.1} parent=1 // pred_check_branch
      %15 = sbr.rel (0) target = $region13
    $region12: #{net_forward.1} parent=1 // pred_region
      _
    $region13: #{net_forward.1} parent=1 // pred_fallthru
      _
    // Predicated region
    $region14: #{net_forward.1} parent=1 // pred_check
      _
    $region15: #{net_forward.1} parent=1 // pred_check_branch
      %17 = sbr.rel (0) target = $region17
    $region16: #{net_forward.1} parent=1 // pred_region
      _
    $region17: #{net_forward.1} parent=1 // pred_fallthru
      _
    %p18 = scmp.eq.s32.totalorder 0, 0
    // Predicated region
    $region18: #{net_forward.1} parent=1 // pred_check
      %p19 = pneg %p18
    $region19: #{net_forward.1} parent=1 // pred_check_branch
      %21 = sbr.rel (%p19) target = $region21
    $region20: #{net_forward.1} parent=1 // pred_region
      %vm22 = vcmask 130048
      %23 = vst.msk [vmem:[#allocation2] sm:$0xff] %vm22, 0.0
      %24 = vst.msk [vmem:[#allocation3] sm:$0xff] %vm22, 0.0
    $region21: #{net_forward.1} parent=1 // pred_fallthru
      _
    %v25 = vld [vmem:[%s2] sm:$0xff]
    %v26 = vld [vmem:[%s2 + $0x8] sm:$0xff]
    %v27 = vld [vmem:[%s2 + $0x10] sm:$0xff]
    %v28 = vld [vmem:[%s2 + $0x18] sm:$0xff]
    %v29 = vld [vmem:[%s2 + $0x20] sm:$0xff]
    %v30 = vld [vmem:[%s2 + $0x28] sm:$0xff]
    %v31 = vld [vmem:[%s2 + $0x30] sm:$0xff]
    %v32 = vld [vmem:[%s2 + $0x38] sm:$0xff]
    %v33 = vld [vmem:[%s2 + $0x40] sm:$0xff]
    %v34 = vld [vmem:[%s2 + $0x48] sm:$0xff]
    %v35 = vld [vmem:[%s2 + $0x50] sm:$0xff]
    %v36 = vld [vmem:[%s2 + $0x58] sm:$0xff]
    %v37 = vld [vmem:[%s2 + $0x60] sm:$0xff]
    %v38 = vld [vmem:[%s2 + $0x68] sm:$0xff]
    %v39 = vld [vmem:[%s2 + $0x70] sm:$0xff]
    %v40 = vld [vmem:[%s2 + $0x78] sm:$0xff]
    %v41 = vld [vmem:[%s2 + $0x80] sm:$0xff]
    %v42 = vld [vmem:[%s2 + $0x88] sm:$0xff]
    %v43 = vld [vmem:[%s2 + $0x90] sm:$0xff]
    %v44 = vld [vmem:[%s2 + $0x98] sm:$0xff]
    %v45 = vld [vmem:[%s2 + $0xa0] sm:$0xff]
    %v46 = vld [vmem:[%s2 + $0xa8] sm:$0xff]
    %v47 = vld [vmem:[%s2 + $0xb0] sm:$0xff]
    %v48 = vld [vmem:[%s2 + $0xb8] sm:$0xff]
    %v49 = vld [vmem:[%s2 + $0xc0] sm:$0xff]
    %v50 = vld [vmem:[%s2 + $0xc8] sm:$0xff]
    %v51 = vld [vmem:[%s2 + $0xd0] sm:$0xff]
    %v52 = vld [vmem:[%s2 + $0xd8] sm:$0xff]
    %v53 = vld [vmem:[%s2 + $0xe0] sm:$0xff]
    %v54 = vld [vmem:[%s2 + $0xe8] sm:$0xff]
    %v55 = vld [vmem:[%s2 + $0xf0] sm:$0xff]
    %v56 = vld [vmem:[%s2 + $0xf8] sm:$0xff]
    %v57 = vld [vmem:[#allocation2] sm:$0xff]
    %v58 = vld [vmem:[%s0] sm:$0xff]
    %v59 = vld [vmem:[%s0 + $0x8] sm:$0xff]
    %60 = vmatprep.subr.mxu0 0.0
    %61 = vmatpush1.msra.mxu0 %v25
    %62 = vmatprep.subr.mxu0 0.0
    %63 = vmatpush1.msra.mxu0 %v26
    %64 = vmatprep.subr.mxu0 0.0
    %65 = vmatpush1.msra.mxu0 %v27
    %66 = vmatprep.subr.mxu0 0.0
    %67 = vmatpush1.msra.mxu0 %v28
    %68 = vmatprep.subr.mxu0 0.0
    %69 = vmatpush1.msra.mxu0 %v29
    %70 = vmatprep.subr.mxu0 0.0
    %71 = vmatpush1.msra.mxu0 %v30
    %72 = vmatprep.subr.mxu0 0.0
    %73 = vmatpush1.msra.mxu0 %v31
    %74 = vmatprep.subr.mxu0 0.0
    %75 = vmatpush1.msra.mxu0 %v32
    %76 = vmatprep.subr.mxu0 0.0
    %77 = vmatpush1.msra.mxu0 %v33
    %78 = vmatprep.subr.mxu0 0.0
    %79 = vmatpush1.msra.mxu0 %v34
    %80 = vmatprep.subr.mxu0 0.0
    %81 = vmatpush1.msra.mxu0 %v35
    %82 = vmatprep.subr.mxu0 0.0
    %83 = vmatpush1.msra.mxu0 %v36
    %84 = vmatprep.subr.mxu0 0.0
    %85 = vmatpush1.msra.mxu0 %v37
    %86 = vmatprep.subr.mxu0 0.0
    %87 = vmatpush1.msra.mxu0 %v38
    %88 = vmatprep.subr.mxu0 0.0
    %89 = vmatpush1.msra.mxu0 %v39
    %90 = vmatprep.subr.mxu0 0.0
    %91 = vmatpush1.msra.mxu0 %v40
    %92 = vmatprep.subr.mxu0 0.0
    %93 = vmatpush1.msra.mxu0 %v41
    %94 = vmatprep.subr.mxu0 0.0
    %95 = vmatpush1.msra.mxu0 %v42
    %96 = vmatprep.subr.mxu0 0.0
    %97 = vmatpush1.msra.mxu0 %v43
    %98 = vmatprep.subr.mxu0 0.0
    %99 = vmatpush1.msra.mxu0 %v44
    %100 = vmatprep.subr.mxu0 0.0
    %101 = vmatpush1.msra.mxu0 %v45
    %102 = vmatprep.subr.mxu0 0.0
    %103 = vmatpush1.msra.mxu0 %v46
    %104 = vmatprep.subr.mxu0 0.0
    %105 = vmatpush1.msra.mxu0 %v47
    %106 = vmatprep.subr.mxu0 0.0
    %107 = vmatpush1.msra.mxu0 %v48
    %108 = vmatprep.subr.mxu0 0.0
    %109 = vmatpush1.msra.mxu0 %v49
    %110 = vmatprep.subr.mxu0 0.0
    %111 = vmatpush1.msra.mxu0 %v50
    %112 = vmatprep.subr.mxu0 0.0
    %113 = vmatpush1.msra.mxu0 %v51
    %114 = vmatprep.subr.mxu0 0.0
    %115 = vmatpush1.msra.mxu0 %v52
    %116 = vmatprep.subr.mxu0 0.0
    %117 = vmatpush1.msra.mxu0 %v53
    %118 = vmatprep.subr.mxu0 0.0
    %119 = vmatpush1.msra.mxu0 %v54
    %120 = vmatprep.subr.mxu0 0.0
    %121 = vmatpush1.msra.mxu0 %v55
    %122 = vmatprep.subr.mxu0 0.0
    %123 = vmatpush1.msra.mxu0 %v56
    %124 = vmatprep.mubr.f32.mxu0 %v59
    %125 = vmatmul.mubr.f32.gmra.mrb[0].mxu0 %v58
    %v126 = vpop.f32.mrb[0].mxu0
    %v127 = vadd.f32 0.0, %v126
    %v128 = vpop.f32.mrb[0].mxu0
    %129 = vdwg.mxu0
    %v130 = vadd.f32 %v57, %v127
    %vm131 = vcmask 130048
    %132 = vst.msk [vmem:[#allocation2] sm:$0xff] %vm131, %v130
    %v133 = vld [vmem:[#allocation3] sm:$0xff]
    %v134 = vld [vmem:[%s1] sm:$0xff]
    %v135 = vld [vmem:[%s1 + $0x8] sm:$0xff]
    %136 = vmatprep.subr.mxu0 0.0
    %137 = vmatpush1.msra.mxu0 %v25
    %138 = vmatprep.subr.mxu0 0.0
    %139 = vmatpush1.msra.mxu0 %v26
    %140 = vmatprep.subr.mxu0 0.0
    %141 = vmatpush1.msra.mxu0 %v27
    %142 = vmatprep.subr.mxu0 0.0
    %143 = vmatpush1.msra.mxu0 %v28
    %144 = vmatprep.subr.mxu0 0.0
    %145 = vmatpush1.msra.mxu0 %v29
    %146 = vmatprep.subr.mxu0 0.0
    %147 = vmatpush1.msra.mxu0 %v30
    %148 = vmatprep.subr.mxu0 0.0
    %149 = vmatpush1.msra.mxu0 %v31
    %150 = vmatprep.subr.mxu0 0.0
    %151 = vmatpush1.msra.mxu0 %v32
    %152 = vmatprep.subr.mxu0 0.0
    %153 = vmatpush1.msra.mxu0 %v33
    %154 = vmatprep.subr.mxu0 0.0
    %155 = vmatpush1.msra.mxu0 %v34
    %156 = vmatprep.subr.mxu0 0.0
    %157 = vmatpush1.msra.mxu0 %v35
    %158 = vmatprep.subr.mxu0 0.0
    %159 = vmatpush1.msra.mxu0 %v36
    %160 = vmatprep.subr.mxu0 0.0
    %161 = vmatpush1.msra.mxu0 %v37
    %162 = vmatprep.subr.mxu0 0.0
    %163 = vmatpush1.msra.mxu0 %v38
    %164 = vmatprep.subr.mxu0 0.0
    %165 = vmatpush1.msra.mxu0 %v39
    %166 = vmatprep.subr.mxu0 0.0
    %167 = vmatpush1.msra.mxu0 %v40
    %168 = vmatprep.subr.mxu0 0.0
    %169 = vmatpush1.msra.mxu0 %v41
    %170 = vmatprep.subr.mxu0 0.0
    %171 = vmatpush1.msra.mxu0 %v42
    %172 = vmatprep.subr.mxu0 0.0
    %173 = vmatpush1.msra.mxu0 %v43
    %174 = vmatprep.subr.mxu0 0.0
    %175 = vmatpush1.msra.mxu0 %v44
    %176 = vmatprep.subr.mxu0 0.0
    %177 = vmatpush1.msra.mxu0 %v45
    %178 = vmatprep.subr.mxu0 0.0
    %179 = vmatpush1.msra.mxu0 %v46
    %180 = vmatprep.subr.mxu0 0.0
    %181 = vmatpush1.msra.mxu0 %v47
    %182 = vmatprep.subr.mxu0 0.0
    %183 = vmatpush1.msra.mxu0 %v48
    %184 = vmatprep.subr.mxu0 0.0
    %185 = vmatpush1.msra.mxu0 %v49
    %186 = vmatprep.subr.mxu0 0.0
    %187 = vmatpush1.msra.mxu0 %v50
    %188 = vmatprep.subr.mxu0 0.0
    %189 = vmatpush1.msra.mxu0 %v51
    %190 = vmatprep.subr.mxu0 0.0
    %191 = vmatpush1.msra.mxu0 %v52
    %192 = vmatprep.subr.mxu0 0.0
    %193 = vmatpush1.msra.mxu0 %v53
    %194 = vmatprep.subr.mxu0 0.0
    %195 = vmatpush1.msra.mxu0 %v54
    %196 = vmatprep.subr.mxu0 0.0
    %197 = vmatpush1.msra.mxu0 %v55
    %198 = vmatprep.subr.mxu0 0.0
    %199 = vmatpush1.msra.mxu0 %v56
    %200 = vmatprep.mubr.f32.mxu0 %v135
    %201 = vmatmul.mubr.f32.gmra.mrb[0].mxu0 %v134
    %v202 = vpop.f32.mrb[0].mxu0
    %v203 = vadd.f32 0.0, %v202
    %v204 = vpop.f32.mrb[0].mxu0
    %205 = vdwg.mxu0
    %v206 = vadd.f32 %v133, %v203
    %207 = vst.msk [vmem:[#allocation3] sm:$0xff] %vm131, %v206
    // Predicated region
    $region22: #{net_forward.1} parent=1 // pred_check
      %p208 = pneg %p18
    $region23: #{net_forward.1} parent=1 // pred_check_branch
      %210 = sbr.rel (%p208) target = $region25
    $region24: #{net_forward.1} parent=1 // pred_region
      %v211 = vld [vmem:[%s3] sm:$0xff]
      %v212 = vld [vmem:[#allocation2] sm:$0xff]
      %v213 = vlaneseq
      %v214 = vshrl.u32 %v213, 7
      %v215 = vsub.s32 0, %v214
      %v216 = vrot.slane %v211, %v215
      %v217 = vadd.f32 %v212, %v216
      %v218 = vsel %vm131, %v217, 0.0
      %v219 = vrot.slane %v218, 4
      %v220 = vadd.f32 %v218, %v219
      %v221 = vrot.slane %v220, 2
      %v222 = vadd.f32 %v220, %v221
      %v223 = vrot.slane %v222, 1
      %v224 = vadd.f32 %v222, %v223
      %v225 = vmul.f32 %v224, 0.125
      %v226 = vsub.f32 %v217, %v225
      %v227 = vmul.f32 %v226, %v226
      %v228 = vsel %vm131, %v227, 0.0
      %v229 = vrot.slane %v228, 4
      %v230 = vadd.f32 %v228, %v229
      %v231 = vrot.slane %v230, 2
      %v232 = vadd.f32 %v230, %v231
      %v233 = vrot.slane %v232, 1
      %v234 = vadd.f32 %v232, %v233
      %v235 = vmul.f32 %v234, 0.125
      %v236 = vadd.f32 %v235, 1e-05
      %v237 = vrsqrt.pop %v236
      %v238 = vmul.f32 %v226, %v237
      %v239 = vlaneseq
      %v240 = vshrl.u32 %v239, 7
      %v241 = vsub.s32 1, %v240
      %v242 = vrot.slane %v211, %v241
      %v243 = vmul.f32 %v238, %v242
      %v244 = vlaneseq
      %v245 = vshrl.u32 %v244, 7
      %v246 = vsub.s32 2, %v245
      %v247 = vrot.slane %v211, %v246
      %v248 = vadd.f32 %v243, %v247
      %v249 = vtanh.pop %v248
      %250 = vxpose.xlu0.b32.start [1/16] %v249, 128
      %251 = vxpose.xlu0.b32.cont [2/16] 0.0, 128
      %252 = vxpose.xlu0.b32.cont [3/16] 0.0, 128
      %253 = vxpose.xlu0.b32.cont [4/16] 0.0, 128
      %254 = vxpose.xlu0.b32.cont [5/16] 0.0, 128
      %255 = vxpose.xlu0.b32.cont [6/16] 0.0, 128
      %256 = vxpose.xlu0.b32.cont [7/16] 0.0, 128
      %257 = vxpose.xlu0.b32.cont [8/16] 0.0, 128
      %258 = vxpose.xlu0.b32.cont [9/16] 0.0, 128
      %259 = vxpose.xlu0.b32.cont [10/16] 0.0, 128
      %260 = vxpose.xlu0.b32.cont [11/16] 0.0, 128
      %261 = vxpose.xlu0.b32.cont [12/16] 0.0, 128
      %262 = vxpose.xlu0.b32.cont [13/16] 0.0, 128
      %263 = vxpose.xlu0.b32.cont [14/16] 0.0, 128
      %264 = vxpose.xlu0.b32.cont [15/16] 0.0, 128
      %265 = vxpose.xlu0.b32.end [16/16] 0.0, 128
      %v266 = vpop.trf.xlu0
      %v267 = vpop.trf.xlu0
      %v268 = vpop.trf.xlu0
      %v269 = vpop.trf.xlu0
      %v270 = vpop.trf.xlu0
      %v271 = vpop.trf.xlu0
      %v272 = vpop.trf.xlu0
      %v273 = vpop.trf.xlu0
      %v274 = vpop.trf.xlu0
      %v275 = vpop.trf.xlu0
      %v276 = vpop.trf.xlu0
      %v277 = vpop.trf.xlu0
      %v278 = vpop.trf.xlu0
      %v279 = vpop.trf.xlu0
      %v280 = vpop.trf.xlu0
      %v281 = vpop.trf.xlu0
      %v282 = vld [vmem:[#allocation3] sm:$0xff]
      %v283 = vadd.f32 %v282, %v216
      %v284 = vsel %vm131, %v283, 0.0
      %v285 = vrot.slane %v284, 4
      %v286 = vadd.f32 %v284, %v285
      %v287 = vrot.slane %v286, 2
      %v288 = vadd.f32 %v286, %v287
      %v289 = vrot.slane %v288, 1
      %v290 = vadd.f32 %v288, %v289
      %v291 = vmul.f32 %v290, 0.125
      %v292 = vsub.f32 %v283, %v291
      %v293 = vmul.f32 %v292, %v292
      %v294 = vsel %vm131, %v293, 0.0
      %v295 = vrot.slane %v294, 4
      %v296 = vadd.f32 %v294, %v295
      %v297 = vrot.slane %v296, 2
      %v298 = vadd.f32 %v296, %v297
      %v299 = vrot.slane %v298, 1
      %v300 = vadd.f32 %v298, %v299
      %v301 = vmul.f32 %v300, 0.125
      %v302 = vadd.f32 %v301, 1e-05
      %v303 = vrsqrt.pop %v302
      %v304 = vmul.f32 %v292, %v303
      %v305 = vlaneseq
      %v306 = vshrl.u32 %v305, 7
      %v307 = vsub.s32 3, %v306
      %v308 = vrot.slane %v211, %v307
      %v309 = vmul.f32 %v304, %v308
      %v310 = vlaneseq
      %v311 = vshrl.u32 %v310, 7
      %v312 = vsub.s32 4, %v311
      %v313 = vrot.slane %v211, %v312
      %v314 = vadd.f32 %v309, %v313
      %v315 = vtanh.pop %v314
      %316 = vxpose.xlu0.b32.start [1/16] %v315, 128
      %317 = vxpose.xlu0.b32.cont [2/16] 0.0, 128
      %318 = vxpose.xlu0.b32.cont [3/16] 0.0, 128
      %319 = vxpose.xlu0.b32.cont [4/16] 0.0, 128
      %320 = vxpose.xlu0.b32.cont [5/16] 0.0, 128
      %321 = vxpose.xlu0.b32.cont [6/16] 0.0, 128
      %322 = vxpose.xlu0.b32.cont [7/16] 0.0, 128
      %323 = vxpose.xlu0.b32.cont [8/16] 0.0, 128
      %324 = vxpose.xlu0.b32.cont [9/16] 0.0, 128
      %325 = vxpose.xlu0.b32.cont [10/16] 0.0, 128
      %326 = vxpose.xlu0.b32.cont [11/16] 0.0, 128
      %327 = vxpose.xlu0.b32.cont [12/16] 0.0, 128
      %328 = vxpose.xlu0.b32.cont [13/16] 0.0, 128
      %329 = vxpose.xlu0.b32.cont [14/16] 0.0, 128
      %330 = vxpose.xlu0.b32.cont [15/16] 0.0, 128
      %331 = vxpose.xlu0.b32.end [16/16] 0.0, 128
      %v332 = vpop.trf.xlu0
      %v333 = vpop.trf.xlu0
      %v334 = vpop.trf.xlu0
      %v335 = vpop.trf.xlu0
      %v336 = vpop.trf.xlu0
      %v337 = vpop.trf.xlu0
      %v338 = vpop.trf.xlu0
      %v339 = vpop.trf.xlu0
      %v340 = vpop.trf.xlu0
      %v341 = vpop.trf.xlu0
      %v342 = vpop.trf.xlu0
      %v343 = vpop.trf.xlu0
      %v344 = vpop.trf.xlu0
      %v345 = vpop.trf.xlu0
      %v346 = vpop.trf.xlu0
      %v347 = vpop.trf.xlu0
      %v348 = vmul.f32 %v266, %v332
      %v349 = vmul.f32 %v267, %v333
      %vm350 = vcmask 64512
      %v351 = vsel %vm350, %v348, 0.0
      %v352 = vsel %vm350, %v349, 0.0
      %v353 = vadd.f32 %v351, %v352
      %v354 = vrot.slane %v353, 4
      %v355 = vadd.f32 %v353, %v354
      %v356 = vrot.slane %v355, 2
      %v357 = vadd.f32 %v355, %v356
      %v358 = vrot.slane %v357, 1
      %v359 = vadd.f32 %v357, %v358
      %v360 = vmul.f32 %v266, %v266
      %v361 = vmul.f32 %v267, %v267
      %v362 = vsel %vm350, %v360, 0.0
      %v363 = vsel %vm350, %v361, 0.0
      %v364 = vadd.f32 %v362, %v363
      %v365 = vrot.slane %v364, 4
      %v366 = vadd.f32 %v364, %v365
      %v367 = vrot.slane %v366, 2
      %v368 = vadd.f32 %v366, %v367
      %v369 = vrot.slane %v368, 1
      %v370 = vadd.f32 %v368, %v369
      %v371 = vmul.f32 %v332, %v332
      %v372 = vmul.f32 %v333, %v333
      %v373 = vsel %vm350, %v371, 0.0
      %v374 = vsel %vm350, %v372, 0.0
      %v375 = vadd.f32 %v373, %v374
      %v376 = vrot.slane %v375, 4
      %v377 = vadd.f32 %v375, %v376
      %v378 = vrot.slane %v377, 2
      %v379 = vadd.f32 %v377, %v378
      %v380 = vrot.slane %v379, 1
      %v381 = vadd.f32 %v379, %v380
      %v382 = vmax.f32 %v370, 1e-16
      %v383 = vrsqrt.pop %v382
      %v384 = vmul.f32 %v359, %v383
      %v385 = vmax.f32 %v381, 1e-16
      %v386 = vrsqrt.pop %v385
      %v387 = vmul.f32 %v384, %v386
      %vm388 = vcmask 57344
      %389 = vst.msk [vmem:[#allocation4] sm:$0x1] %vm388, %v387
    $region25: #{net_forward.1} parent=1 // pred_fallthru
      _
    // Predicated region
    $region26: #{net_forward.1} parent=1 // pred_check
      _
    $region27: #{net_forward.1} parent=1 // pred_check_branch
      %391 = sbr.rel (0) target = $region29
    $region28: #{net_forward.1} parent=1 // pred_region
      %s393 = ssub.s32 16, 16
      %394 = vsyncadd [#allocation5], %s393
      %s396 = sshll.u32 [#allocation4], 4
      %s397 = int_to_ptr.vmem [resolvable:$true] %s396
      %399 = dma.vmem_to_hbm [thread:$0]  %s397, 16, %s4, [#allocation5]
    $region29: #{net_forward.1} parent=1 // pred_fallthru
      _
    // Predicated region
    $region30: #{net_forward.1} parent=1 // pred_check
      _
    $region31: #{net_forward.1} parent=1 // pred_check_branch
      %401 = sbr.rel (0) target = $region33
    $region32: #{net_forward.1} parent=1 // pred_region
      %402 = dma.done [#allocation5], 16
    $region33: #{net_forward.1} parent=1 // pred_fallthru
      _
    %403 = vsyncpa [#allocation5], 1

</llo_original>
